<compile_context>
chip_gen: v7x
topology: tpu7x:2x2x1
jax: 0.10.0
libtpu: 0.0.40
codegen_flags: <defaults>
</compile_context>

<pallas_src>
import math
import functools

import numpy as np
import jax
import jax.numpy as jnp
from jax import lax
from jax.experimental import pallas as pl
from jax.experimental.pallas import tpu as pltpu

_MASK_VALUE = -1e30  # finite "minus infinity" for masked (padded) kv columns


def _flash_attn_kernel(q_ref, k_ref, v_ref, o_ref, m_ref, l_ref, acc_ref, *,
                       scale2, matmul_dtype, exp_dtype, kv_len, tkv,
                       needs_mask, approx_recip):
    ki = pl.program_id(2)

    @pl.when(ki == 0)
    def _():
        m_ref[...] = jnp.full_like(m_ref, -jnp.inf)
        l_ref[...] = jnp.zeros_like(l_ref)
        acc_ref[...] = jnp.zeros_like(acc_ref)

    # Fold the softmax scale into q: ch*tq VPU muls instead of tkv*tq on logits.
    q = q_ref[0].astype(jnp.float32) * scale2      # [C, tq]
    k = k_ref[0]                                   # [C, tkv]
    v = v_ref[0]                                   # [C, tkv]
    if matmul_dtype is not None:                   # bf16 MXU issue rate
        q = q.astype(matmul_dtype)
        k = k.astype(matmul_dtype)
        v = v.astype(matmul_dtype)

    # logits, transposed: s[s_idx, t] = sum_c k[c, s_idx] * q[c, t]
    # (softmax axis = sublane axis; T stays on the lane axis everywhere)
    s = lax.dot_general(k, q, (((0,), (0,)), ((), ())),
                        preferred_element_type=jnp.float32)       # [tkv, tq]
    if needs_mask:
        kv_idx = ki * tkv + lax.broadcasted_iota(jnp.int32, s.shape, 0)
        s = jnp.where(kv_idx < kv_len, s, _MASK_VALUE)

    m_prev = m_ref[...]                                           # [1, tq]
    m_new = jnp.maximum(m_prev, jnp.max(s, axis=0, keepdims=True))
    alpha = jnp.exp(m_prev - m_new)                               # [1, tq] f32
    if exp_dtype is not None:      # bf16 EUP exp on v6e/v7x (~2x throughput)
        p = jnp.exp((s - m_new).astype(exp_dtype))
    else:
        p = jnp.exp(s - m_new)                                    # [tkv, tq]

    l_ref[...] = alpha * l_ref[...] + jnp.sum(p, axis=0, keepdims=True,
                                              dtype=jnp.float32)
    p_mm = p if p.dtype == v.dtype else p.astype(v.dtype)
    # a_contrib[c, t] = sum_s v[c, s] * p[s, t] -> [C, tq], lane-dense on T
    acc_ref[...] = alpha * acc_ref[...] + jnp.dot(
        v, p_mm, preferred_element_type=jnp.float32)
    m_ref[...] = m_new

    @pl.when(ki == pl.num_programs(2) - 1)
    def _():
        l = l_ref[...]
        inv_l = pl.reciprocal(l, approx=True) if approx_recip else 1.0 / l
        o_ref[0] = (acc_ref[...] * inv_l).astype(o_ref.dtype)


def _single_kv_attn_kernel(q_ref, k_ref, v_ref, o_ref, *,
                           scale2, matmul_dtype, exp_dtype, kv_len,
                           needs_mask, approx_recip):
    """Fast path when all of T fits in one kv tile: plain softmax, no online
    softmax bookkeeping (no m/l scratch, no alpha rescale)."""
    q = q_ref[0].astype(jnp.float32) * scale2      # [C, tq]
    k = k_ref[0]                                   # [C, tkv]
    v = v_ref[0]
    if matmul_dtype is not None:
        q = q.astype(matmul_dtype)
        k = k.astype(matmul_dtype)
        v = v.astype(matmul_dtype)

    s = lax.dot_general(k, q, (((0,), (0,)), ((), ())),
                        preferred_element_type=jnp.float32)       # [tkv, tq]
    if needs_mask:
        kv_idx = lax.broadcasted_iota(jnp.int32, s.shape, 0)
        s = jnp.where(kv_idx < kv_len, s, _MASK_VALUE)

    m = jnp.max(s, axis=0, keepdims=True)                         # [1, tq]
    if exp_dtype is not None:
        p = jnp.exp((s - m).astype(exp_dtype))
    else:
        p = jnp.exp(s - m)
    l = jnp.sum(p, axis=0, keepdims=True, dtype=jnp.float32)
    p_mm = p if p.dtype == v.dtype else p.astype(v.dtype)
    a = jnp.dot(v, p_mm, preferred_element_type=jnp.float32)      # [C, tq]
    inv_l = pl.reciprocal(l, approx=True) if approx_recip else 1.0 / l
    o_ref[0] = (a * inv_l).astype(o_ref.dtype)


def _round_up(x, m):
    return ((x + m - 1) // m) * m


def _pick_seq_tile(t, target):
    """Largest multiple of 128 <= target that divides t (t is 128-aligned)."""
    if t <= target or t % 128 != 0:
        return t
    tile = max(128, (target // 128) * 128)
    while t % tile != 0:
        tile -= 128
    return tile


def _has_bf16_eup():
    """True on TPU generations with a bf16 EUP/VPU (v6e, v7x)."""
    try:
        kind = jax.devices()[0].device_kind.lower()
    except Exception:
        return False
    return not any(v in kind for v in ("v2", "v3", "v4", "v5"))


def qkv_attention_legacy(qkv, n_heads, *, q_tile=1024, kv_tile=1024,
                         matmul_dtype="auto", exp_dtype="auto",
                         approx_reciprocal=True):
    """qkv: [N, H*3*C, T] -> [N, H*C, T], matching QKVAttentionLegacy.forward.

    matmul_dtype: MXU dtype for both matmuls ("auto" -> bf16 for f32 inputs,
      else the input dtype; pass jnp.float32 for strict f32 parity).
      Accumulation is always f32.
    exp_dtype: dtype of the big softmax exp ("auto" -> bf16 when the MXU path
      is bf16 and the chip has a bf16 EUP, else f32).
    """
    bs, width, length = qkv.shape
    assert width % (3 * n_heads) == 0
    ch = width // (3 * n_heads)
    if ch % 8 != 0:
        # TODO(synk): support head channel counts not divisible by 8 (needs a
        # full-3C block + in-kernel slicing path); UNet heads are 8-aligned.
        raise NotImplementedError("per-head channels must be a multiple of 8")

    in_dtype = np.dtype(qkv.dtype)
    if isinstance(matmul_dtype, str) and matmul_dtype == "auto":
        matmul_dtype = jnp.bfloat16 if in_dtype == np.dtype(jnp.float32) else None
    if matmul_dtype is not None and np.dtype(matmul_dtype) == in_dtype:
        matmul_dtype = None                       # no-op cast
    eff_mm = np.dtype(matmul_dtype) if matmul_dtype is not None else in_dtype
    if isinstance(exp_dtype, str) and exp_dtype == "auto":
        bf16_mm = eff_mm == np.dtype(jnp.bfloat16)
        exp_dtype = jnp.bfloat16 if (bf16_mm and _has_bf16_eup()) else None
    if exp_dtype is not None and np.dtype(exp_dtype) == np.dtype(jnp.float32):
        exp_dtype = None

    B = bs * n_heads
    x = qkv.reshape(B, 3 * ch, length)            # q/k/v = channel blocks 0,1,2

    # Pad the lane (T) axis to a multiple of 128; padded kv columns are masked
    # in-kernel, padded q columns are sliced off afterwards.
    t_pad = _round_up(length, 128)
    needs_mask = t_pad != length
    if needs_mask:
        x = jnp.pad(x, ((0, 0), (0, 0), (0, t_pad - length)))

    tq = _pick_seq_tile(t_pad, q_tile)
    tkv = _pick_seq_tile(t_pad, kv_tile)
    # v7x has 2 TensorCores; keep the "parallel" grid extent >= 2 if possible.
    if B * (t_pad // tq) < 2 and t_pad % 256 == 0:
        tq = t_pad // 2

    scale2 = 1.0 / math.sqrt(ch)      # (1/sqrt(sqrt(ch)))**2, folded into q

    # Explicit scoped-VMEM budget: [tkv,tq] logits (f32) + exp, double-buffered
    # q/k/v/out tiles, f32 accumulator; 2x headroom, capped below v7x physical.
    exp_size = np.dtype(exp_dtype).itemsize if exp_dtype is not None else 4
    mm_size = np.dtype(eff_mm).itemsize
    est = (tq * tkv * (4 + exp_size)
           + 2 * ch * (tq + 2 * tkv) * in_dtype.itemsize
           + 2 * ch * tq * in_dtype.itemsize
           + ch * tq * 4 + ch * (tq + 2 * tkv) * mm_size + 4 * tq * 4)
    vmem_limit = int(min(max(2 * est, 32 * 1024 * 1024), 48 * 1024 * 1024))

    n_q, n_kv = t_pad // tq, t_pad // tkv

    if n_kv == 1:
        kernel = functools.partial(
            _single_kv_attn_kernel, scale2=scale2, matmul_dtype=matmul_dtype,
            exp_dtype=exp_dtype, kv_len=length, needs_mask=needs_mask,
            approx_recip=approx_reciprocal)
        out = pl.pallas_call(
            kernel,
            out_shape=jax.ShapeDtypeStruct((B, ch, t_pad), qkv.dtype),
            grid=(B, n_q),
            in_specs=[
                pl.BlockSpec((1, ch, tq), lambda b, qi: (b, 0, qi)),     # q
                pl.BlockSpec((1, ch, tkv), lambda b, qi: (b, 1, 0)),     # k
                pl.BlockSpec((1, ch, tkv), lambda b, qi: (b, 2, 0)),     # v
            ],
            out_specs=pl.BlockSpec((1, ch, tq), lambda b, qi: (b, 0, qi)),
            compiler_params=pltpu.CompilerParams(
                dimension_semantics=("parallel", "parallel"),
                vmem_limit_bytes=vmem_limit),
        )(x, x, x)
    else:
        kernel = functools.partial(
            _flash_attn_kernel, scale2=scale2, matmul_dtype=matmul_dtype,
            exp_dtype=exp_dtype, kv_len=length, tkv=tkv,
            needs_mask=needs_mask, approx_recip=approx_reciprocal)
        out = pl.pallas_call(
            kernel,
            out_shape=jax.ShapeDtypeStruct((B, ch, t_pad), qkv.dtype),
            grid=(B, n_q, n_kv),
            in_specs=[
                # q tile resident across the kv axis (index map ignores ki)
                pl.BlockSpec((1, ch, tq), lambda b, qi, ki: (b, 0, qi)),
                pl.BlockSpec((1, ch, tkv), lambda b, qi, ki: (b, 1, ki)),  # k
                pl.BlockSpec((1, ch, tkv), lambda b, qi, ki: (b, 2, ki)),  # v
            ],
            out_specs=pl.BlockSpec((1, ch, tq), lambda b, qi, ki: (b, 0, qi)),
            scratch_shapes=[
                pltpu.VMEM((1, tq), jnp.float32),    # running max  m
                pltpu.VMEM((1, tq), jnp.float32),    # running sum  l
                pltpu.VMEM((ch, tq), jnp.float32),   # output accumulator
            ],
            compiler_params=pltpu.CompilerParams(
                dimension_semantics=("parallel", "parallel", "arbitrary"),
                vmem_limit_bytes=vmem_limit),
        )(x, x, x)

    if needs_mask:
        out = out[:, :, :length]
    return out.reshape(bs, n_heads * ch, length)


def _reference(qkv, n_heads):
    bs, width, length = qkv.shape
    ch = width // (3 * n_heads)
    x = qkv.reshape(bs * n_heads, 3 * ch, length)
    q, k, v = x[:, :ch], x[:, ch:2 * ch], x[:, 2 * ch:]
    scale = 1.0 / math.sqrt(math.sqrt(ch))
    w = jnp.einsum('bct,bcs->bts', q * scale, k * scale)
    w = jax.nn.softmax(w.astype(jnp.float32), axis=-1).astype(w.dtype)
    a = jnp.einsum('bts,bcs->bct', w, v)
    return a.reshape(bs, -1, length)


if __name__ == "__main__":
    key = jax.random.PRNGKey(0)
    k1, k2, k3 = jax.random.split(key, 3)

    # Case 1: tiny UNet-like shapes (T=16 padded to one 128-wide kv tile) —
    # strict f32 path, single-kv-tile fast kernel + padded-column masking.
    N, H, C, T = 2, 2, 8, 16
    qkv1 = jax.random.normal(k1, (N, H * 3 * C, T), dtype=jnp.float32)
    out1 = jax.block_until_ready(
        qkv_attention_legacy(qkv1, n_heads=H, matmul_dtype=jnp.float32,
                             exp_dtype=jnp.float32, approx_reciprocal=False))
    ref1 = _reference(qkv1, H)
    assert out1.shape == (N, H * C, T)
    assert jnp.allclose(out1, ref1, atol=1e-3, rtol=1e-3)

    # Case 2: flash online-softmax path (2x2 q/kv tiles) with the default
    # bf16 MXU (and bf16 exp where the chip supports it) fast path.
    N2, H2, C2, T2 = 1, 3, 16, 256
    qkv2 = jax.random.normal(k2, (N2, H2 * 3 * C2, T2), dtype=jnp.float32)
    out2 = jax.block_until_ready(
        qkv_attention_legacy(qkv2, n_heads=H2, q_tile=128, kv_tile=128))
    ref2 = _reference(qkv2, H2)
    assert out2.shape == (N2, H2 * C2, T2)
    assert jnp.allclose(out2, ref2, atol=3e-2, rtol=3e-2)

    # Case 3: unaligned T (200 -> padded to 256; second kv tile partially
    # masked) through the flash kernel, strict f32 path.
    N3, H3, C3, T3 = 1, 2, 8, 200
    qkv3 = jax.random.normal(k3, (N3, H3 * 3 * C3, T3), dtype=jnp.float32)
    out3 = jax.block_until_ready(
        qkv_attention_legacy(qkv3, n_heads=H3, q_tile=128, kv_tile=128,
                             matmul_dtype=jnp.float32, exp_dtype=jnp.float32,
                             approx_reciprocal=False))
    ref3 = _reference(qkv3, H3)
    assert out3.shape == (N3, H3 * C3, T3)
    assert jnp.allclose(out3, ref3, atol=1e-3, rtol=1e-3)

    print("KERNEL_OK")
</pallas_src>

<mosaic_0001>
module attributes {stable_mosaic.version = 11 : i64} {
  func.func @_single_kv_attn_kernel(%arg0: i32, %arg1: i32, %arg2: memref<1x8x128xf32, #tpu.memory_space<vmem>>, %arg3: memref<1x8x128xf32, #tpu.memory_space<vmem>>, %arg4: memref<1x8x128xf32, #tpu.memory_space<vmem>>, %arg5: memref<1x8x128xf32, #tpu.memory_space<vmem>>) attributes {dimension_semantics = [#tpu.dimension_semantics<parallel>, #tpu.dimension_semantics<parallel>], iteration_bounds = array<i64: 4, 1>, scalar_prefetch = 0 : i64, scratch_operands = 0 : i64, tpu.core_type = #tpu.core_type<tc>, window_params = [{transform_indices = @transform_0, window_bounds = array<i64: 1, 8, 128>}, {transform_indices = @transform_1, window_bounds = array<i64: 1, 8, 128>}, {transform_indices = @transform_2, window_bounds = array<i64: 1, 8, 128>}, {transform_indices = @transform_3, window_bounds = array<i64: 1, 8, 128>}]} {
    %c0 = arith.constant 0 : index
    %c0_0 = arith.constant 0 : index
    %c0_1 = arith.constant 0 : index
    %0 = vector.load %arg2[%c0, %c0_0, %c0_1] : memref<1x8x128xf32, #tpu.memory_space<vmem>>, vector<1x8x128xf32>
    %1 = vector.shape_cast %0 : vector<1x8x128xf32> to vector<8x128xf32>
    %cst = arith.constant 0.353553385 : f32
    %2 = vector.broadcast %cst : f32 to vector<8x128xf32>
    %3 = arith.mulf %1, %2 : vector<8x128xf32>
    %c0_2 = arith.constant 0 : index
    %c0_3 = arith.constant 0 : index
    %c0_4 = arith.constant 0 : index
    %4 = vector.load %arg3[%c0_2, %c0_3, %c0_4] : memref<1x8x128xf32, #tpu.memory_space<vmem>>, vector<1x8x128xf32>
    %5 = vector.shape_cast %4 : vector<1x8x128xf32> to vector<8x128xf32>
    %c0_5 = arith.constant 0 : index
    %c0_6 = arith.constant 0 : index
    %c0_7 = arith.constant 0 : index
    %6 = vector.load %arg4[%c0_5, %c0_6, %c0_7] : memref<1x8x128xf32, #tpu.memory_space<vmem>>, vector<1x8x128xf32>
    %7 = vector.shape_cast %6 : vector<1x8x128xf32> to vector<8x128xf32>
    %cst_8 = arith.constant dense<0.000000e+00> : vector<128x128xf32>
    %8 = tpu.matmul %5, %3, %cst_8 {dimension_numbers = #tpu.dot_dimension_numbers<[0], [0], [1], [1], [0, 1, 1, 1], [], []>} : vector<8x128xf32>, vector<8x128xf32>, vector<128x128xf32> -> vector<128x128xf32>
    %9 = tpu.iota {dimensions = array<i32: 0>} : vector<128x128xi32>
    %c16_i32 = arith.constant 16 : i32
    %10 = vector.broadcast %c16_i32 : i32 to vector<128x128xi32>
    %11 = arith.cmpi slt, %9, %10 : vector<128x128xi32>
    %cst_9 = arith.constant -1.000000e+30 : f32
    %12 = vector.broadcast %cst_9 : f32 to vector<128x128xf32>
    %13 = arith.select %11, %8, %12 : vector<128x128xi1>, vector<128x128xf32>
    %cst_10 = arith.constant dense<0xFF800000> : vector<128xf32>
    %14 = vector.multi_reduction <maximumf>, %13, %cst_10 [0] : vector<128x128xf32> to vector<128xf32>
    %15 = vector.shape_cast %14 : vector<128xf32> to vector<1x128xf32>
    %16 = vector.broadcast %15 : vector<1x128xf32> to vector<128x128xf32>
    %17 = arith.subf %13, %16 : vector<128x128xf32>
    %18 = math.exp %17 : vector<128x128xf32>
    %cst_11 = arith.constant dense<0.000000e+00> : vector<128xf32>
    %19 = vector.multi_reduction <add>, %18, %cst_11 [0] : vector<128x128xf32> to vector<128xf32>
    %20 = vector.shape_cast %19 : vector<128xf32> to vector<1x128xf32>
    %cst_12 = arith.constant dense<0.000000e+00> : vector<8x128xf32>
    %21 = tpu.matmul %7, %18, %cst_12 {dimension_numbers = #tpu.dot_dimension_numbers<[1], [0], [0], [1], [0, 0, 1, 1], [], []>} : vector<8x128xf32>, vector<128x128xf32>, vector<8x128xf32> -> vector<8x128xf32>
    %cst_13 = arith.constant 1.000000e+00 : f32
    %22 = vector.broadcast %cst_13 : f32 to vector<1x128xf32>
    %23 = arith.divf %22, %20 : vector<1x128xf32>
    %24 = vector.broadcast %23 : vector<1x128xf32> to vector<8x128xf32>
    %25 = arith.mulf %21, %24 : vector<8x128xf32>
    %c0_14 = arith.constant 0 : index
    %c0_15 = arith.constant 0 : index
    %c0_16 = arith.constant 0 : index
    %26 = vector.load %arg5[%c0_14, %c0_15, %c0_16] : memref<1x8x128xf32, #tpu.memory_space<vmem>>, vector<1x8x128xf32>
    %27 = vector.shape_cast %26 : vector<1x8x128xf32> to vector<8x128xf32>
    %28 = vector.shape_cast %25 : vector<8x128xf32> to vector<1x8x128xf32>
    tpu.vector_store %arg5[%c0_14, %c0_15, %c0_16], %28 {strides = array<i32>} : memref<1x8x128xf32, #tpu.memory_space<vmem>>, vector<1x8x128xf32>,
    return
  }
  func.func @transform_0(%arg0: i32, %arg1: i32) -> (i32, i32, i32) {
    %c0_i32 = arith.constant 0 : i32
    %c0_i32_0 = arith.constant 0 : i32
    return %arg0, %c0_i32, %arg1 : i32, i32, i32
  }
  func.func @transform_1(%arg0: i32, %arg1: i32) -> (i32, i32, i32) {
    %c1_i32 = arith.constant 1 : i32
    %c0_i32 = arith.constant 0 : i32
    %c0_i32_0 = arith.constant 0 : i32
    return %arg0, %c1_i32, %c0_i32 : i32, i32, i32
  }
  func.func @transform_2(%arg0: i32, %arg1: i32) -> (i32, i32, i32) {
    %c2_i32 = arith.constant 2 : i32
    %c0_i32 = arith.constant 0 : i32
    %c0_i32_0 = arith.constant 0 : i32
    return %arg0, %c2_i32, %c0_i32 : i32, i32, i32
  }
  func.func @transform_3(%arg0: i32, %arg1: i32) -> (i32, i32, i32) {
    %c0_i32 = arith.constant 0 : i32
    %c0_i32_0 = arith.constant 0 : i32
    return %arg0, %c0_i32, %arg1 : i32, i32, i32
  }
}

</mosaic_0001>

<llo_original>
// kernel: tpu_custom_call.1
$region0: #{tpu_custom_call.1}
  #allocation0 [shape = 'u32[]', space=smem, size = 0x4, offset = 0x4, fixed_abs, tag = 'smem constant byte address 0x4 - core index']
  #allocation1 [shape = 'u32[144,128]{1,0:T(1,128)}', space=vmem, size = 0x12000, scoped, tag = 'internal scratch']
  %s0 = inlined_call_operand.hbm [shape: f32[4,24,128], index: 0, kind: input, shape index: {}]
  %s1 = inlined_call_operand.hbm [shape: f32[4,24,128], index: 1, kind: input, shape index: {}]
  %s2 = inlined_call_operand.hbm [shape: f32[4,24,128], index: 2, kind: input, shape index: {}]
  %s3 = inlined_call_operand.hbm [shape: f32[4,8,128], index: 3, kind: output, shape index: {}]
  %s4 = sld [smem:[#allocation0]]
  $region57: #{tpu_custom_call.1} parent=0
    _
  %s6 = ssub.s32 1, %s4
  %s7 = scalar_select 0, %s6, %s4
  $region1: #{tpu_custom_call.1} parent=0
    #allocation2 [shape = 'u8[8192]{0}', space=vmem, size = 0x2000, scoped, tag = 'input window, operand 0']
    #allocation3 [shape = 's32[2]{0}', space=sflag, size = 0x8, scoped, tag = 'scoped memory for tpu_custom_call.1']
    #allocation4 [shape = 's32[2]{0}', space=sflag, size = 0x8, scoped, tag = 'scoped memory for tpu_custom_call.1']
    #allocation5 [shape = 'u8[8192]{0}', space=vmem, size = 0x2000, scoped, tag = 'input window, operand 1']
    #allocation6 [shape = 's32[2]{0}', space=sflag, size = 0x8, scoped, tag = 'scoped memory for tpu_custom_call.1']
    #allocation7 [shape = 'u8[8192]{0}', space=vmem, size = 0x2000, scoped, tag = 'input window, operand 2']
    #allocation8 [shape = 'u8[8192]{0}', space=vmem, size = 0x2000, scoped, tag = 'output window, operand 0']
    %8 = vsyncpa [#allocation3], 0
    %s9 = scalar_lea.sflag [#allocation3], 1
    %10 = vsyncpa %s9, 0
    %11 = vsyncpa [#allocation6], 0
    %s12 = scalar_lea.sflag [#allocation6], 1
    %13 = vsyncpa %s12, 0
    %14 = vsyncpa [#allocation4], 0
    %s15 = scalar_lea.sflag [#allocation4], 1
    %16 = vsyncpa %s15, 0
    loop: start=0, step=1, limit=6
    $region2: #{tpu_custom_call.1} parent=1 // loop_pre_header
      _
    $region3: #{tpu_custom_call.1} parent=1 // loop_header
      %s18 = sphi 0, %s22
      %p19 = scmp.ge.s32.totalorder %s18, 6
      %s25 = sphi 0, %s37
      %s26 = sphi 0, %s33
      %s27 = sphi 0, %s25
      %s28 = sphi 0, %s26
      %s29 = sphi 0, %s27
      %s30 = sphi 0, %s28
      %s42 = sphi 0, %s44
      %s45 = sphi 0, %s42
      %s46 = sphi 0, %s45
      %s62 = sphi 0, %s46
      %s68 = sphi 0, %s70
      %s71 = sphi 0, %s68
      %s72 = sphi 0, %s71
      %s88 = sphi 0, %s72
      %s94 = sphi 0, %s96
      %s97 = sphi 0, %s94
      %s98 = sphi 0, %s97
      %s114 = sphi 0, %s98
      %s122 = sphi 0, %s124
      %s125 = sphi 0, %s122
      %s126 = sphi 0, %s125
      %s142 = sphi 0, %s126
    $region4: #{tpu_custom_call.1} parent=1 // loop_header_branch
      %21 = sbr.rel (%p19) target = $region8
    $region5: #{tpu_custom_call.1} parent=1 // loop_body
      %s23 = ssub.s32 %s18, 1
      %s24 = ssub.s32 %s18, 2
      %s31 = sadd.s32 1, %s26
      %p32 = scmp.ge.s32.totalorder %s31, 1
      %s33 = scalar_select %p32, 0, %s31
      %s34 = sadd.s32 1, %s25
      %s35 = scalar_select %p32, %s34, %s25
      %p36 = scmp.ge.s32.totalorder %s35, 4
      %s37 = scalar_select %p36, 0, %s35
      %s38 = ssub.s32 %s25, %s37
      %s39 = ssub.s32 %s26, %s33
      %s40 = sor.u32 %s38, %s39
      %p41 = scmp.eq.s32.totalorder %s40, 0
      %s43 = sadd.s32 %s42, 1
      %s44 = scalar_select %p41, %s42, %s43
      %p47 = pneg %p41
      %p48 = scmp.eq.s32.totalorder %s18, 3
      %p49 = por %p47, %p48
      %p50 = scmp.ne.s32.totalorder %s42, %s45
      %p51 = scmp.eq.s32.totalorder %s18, 0
      %p52 = por %p50, %p51
      %p53 = scmp.ne.s32.totalorder %s42, %s45
      %p54 = scmp.eq.s32.totalorder %s23, 3
      %p55 = por %p53, %p54
      %p56 = scmp.ne.s32.totalorder %s45, %s46
      %p57 = scmp.eq.s32.totalorder %s23, 0
      %p58 = por %p56, %p57
      %p59 = scmp.ne.s32.totalorder %s45, %s46
      %p60 = scmp.eq.s32.totalorder %s24, 3
      %p61 = por %p59, %p60
      %p63 = scmp.ne.s32.totalorder %s46, %s62
      %p64 = scmp.eq.s32.totalorder %s24, 0
      %p65 = por %p63, %p64
      %s66 = ssub.s32 %s25, %s37
      %p67 = scmp.eq.s32.totalorder %s66, 0
      %s69 = sadd.s32 %s68, 1
      %s70 = scalar_select %p67, %s68, %s69
      %p73 = pneg %p67
      %p74 = scmp.eq.s32.totalorder %s18, 3
      %p75 = por %p73, %p74
      %p76 = scmp.ne.s32.totalorder %s68, %s71
      %p77 = scmp.eq.s32.totalorder %s18, 0
      %p78 = por %p76, %p77
      %p79 = scmp.ne.s32.totalorder %s68, %s71
      %p80 = scmp.eq.s32.totalorder %s23, 3
      %p81 = por %p79, %p80
      %p82 = scmp.ne.s32.totalorder %s71, %s72
      %p83 = scmp.eq.s32.totalorder %s23, 0
      %p84 = por %p82, %p83
      %p85 = scmp.ne.s32.totalorder %s71, %s72
      %p86 = scmp.eq.s32.totalorder %s24, 3
      %p87 = por %p85, %p86
      %p89 = scmp.ne.s32.totalorder %s72, %s88
      %p90 = scmp.eq.s32.totalorder %s24, 0
      %p91 = por %p89, %p90
      %s92 = ssub.s32 %s25, %s37
      %p93 = scmp.eq.s32.totalorder %s92, 0
      %s95 = sadd.s32 %s94, 1
      %s96 = scalar_select %p93, %s94, %s95
      %p99 = pneg %p93
      %p100 = scmp.eq.s32.totalorder %s18, 3
      %p101 = por %p99, %p100
      %p102 = scmp.ne.s32.totalorder %s94, %s97
      %p103 = scmp.eq.s32.totalorder %s18, 0
      %p104 = por %p102, %p103
      %p105 = scmp.ne.s32.totalorder %s94, %s97
      %p106 = scmp.eq.s32.totalorder %s23, 3
      %p107 = por %p105, %p106
      %p108 = scmp.ne.s32.totalorder %s97, %s98
      %p109 = scmp.eq.s32.totalorder %s23, 0
      %p110 = por %p108, %p109
      %p111 = scmp.ne.s32.totalorder %s97, %s98
      %p112 = scmp.eq.s32.totalorder %s24, 3
      %p113 = por %p111, %p112
      %p115 = scmp.ne.s32.totalorder %s98, %s114
      %p116 = scmp.eq.s32.totalorder %s24, 0
      %p117 = por %p115, %p116
      %s118 = ssub.s32 %s25, %s37
      %s119 = ssub.s32 %s26, %s33
      %s120 = sor.u32 %s118, %s119
      %p121 = scmp.eq.s32.totalorder %s120, 0
      %s123 = sadd.s32 %s122, 1
      %s124 = scalar_select %p121, %s122, %s123
      %p127 = pneg %p121
      %p128 = scmp.eq.s32.totalorder %s18, 3
      %p129 = por %p127, %p128
      %p130 = scmp.ne.s32.totalorder %s122, %s125
      %p131 = scmp.eq.s32.totalorder %s18, 0
      %p132 = por %p130, %p131
      %p133 = scmp.ne.s32.totalorder %s122, %s125
      %p134 = scmp.eq.s32.totalorder %s23, 3
      %p135 = por %p133, %p134
      %p136 = scmp.ne.s32.totalorder %s125, %s126
      %p137 = scmp.eq.s32.totalorder %s23, 0
      %p138 = por %p136, %p137
      %p139 = scmp.ne.s32.totalorder %s125, %s126
      %p140 = scmp.eq.s32.totalorder %s24, 3
      %p141 = por %p139, %p140
      %p143 = scmp.ne.s32.totalorder %s126, %s142
      %p144 = scmp.eq.s32.totalorder %s24, 0
      %p145 = por %p143, %p144
      %p146 = scmp.le.s32.totalorder 1, %s18
      %p147 = scmp.lt.s32.totalorder %s18, 5
      %p148 = pnand %p146, %p147
      %p149 = pneg %p148
      // Predicated region
      $region9: #{tpu_custom_call.1} parent=5 // pred_check
        _
      $region10: #{tpu_custom_call.1} parent=5 // pred_check_branch
        %151 = sbr.rel (%p148) target = $region12
      $region11: #{tpu_custom_call.1} parent=5 // pred_region
        %s152 = ssub.s32 %s18, 1
      $region12: #{tpu_custom_call.1} parent=5 // pred_fallthru
        _
      %p153 = scmp.lt.s32.totalorder %s18, 4
      // Predicated region
      $region13: #{tpu_custom_call.1} parent=5 // pred_check
        %p154 = pneg %p153
      $region14: #{tpu_custom_call.1} parent=5 // pred_check_branch
        %156 = sbr.rel (%p154) target = $region16
      $region15: #{tpu_custom_call.1} parent=5 // pred_region
        // Predicated region
        $region17: #{tpu_custom_call.1} parent=15 // pred_check
          %p157 = pneg %p52
        $region18: #{tpu_custom_call.1} parent=15 // pred_check_branch
          %159 = sbr.rel (%p157) target = $region20
        $region19: #{tpu_custom_call.1} parent=15 // pred_region
          %s160 = sand.u32 %s42, 1
          %s161 = scalar_lea.sflag [#allocation3], %s160
          %s162 = sand.u32 %s42, 1
          %s163 = smul.addr %s162, 8
          %s164 = scalar_lea.vmem [#allocation2], %s163
          %s166 = ssub.s32 128, 128
          %167 = vsyncadd %s161, %s166
          %s168 = smul.addr %s25, 3
          %s169 = sadd.s32 %s26, %s168
          %s170 = smul.addr %s169, 128
          %s171 = scalar_lea.hbm %s0, %s170
          %s173 = sshll.u32 %s164, 4
          %s174 = int_to_ptr.vmem [resolvable:$true] %s173
          %176 = dma.hbm_to_vmem [thread:$0]  %s171, 128, %s174, %s161
        $region20: #{tpu_custom_call.1} parent=15 // pred_fallthru
          _
        // Predicated region
        $region21: #{tpu_custom_call.1} parent=15 // pred_check
          %p177 = pneg %p78
        $region22: #{tpu_custom_call.1} parent=15 // pred_check_branch
          %179 = sbr.rel (%p177) target = $region24
        $region23: #{tpu_custom_call.1} parent=15 // pred_region
          %s180 = sand.u32 %s18, 1
          %s181 = scalar_lea.sflag [#allocation6], %s180
          %s182 = sand.u32 %s68, 1
          %s183 = smul.addr %s182, 8
          %s184 = scalar_lea.vmem [#allocation5], %s183
          %s186 = ssub.s32 128, 128
          %187 = vsyncadd %s181, %s186
          %s188 = smul.addr %s25, 3
          %s189 = sadd.s32 1, %s188
          %s190 = smul.addr %s189, 128
          %s191 = scalar_lea.hbm %s1, %s190
          %s193 = sshll.u32 %s184, 4
          %s194 = int_to_ptr.vmem [resolvable:$true] %s193
          %196 = dma.hbm_to_vmem [thread:$0]  %s191, 128, %s194, %s181
        $region24: #{tpu_custom_call.1} parent=15 // pred_fallthru
          _
        // Predicated region
        $region25: #{tpu_custom_call.1} parent=15 // pred_check
          %p197 = pneg %p104
        $region26: #{tpu_custom_call.1} parent=15 // pred_check_branch
          %199 = sbr.rel (%p197) target = $region28
        $region27: #{tpu_custom_call.1} parent=15 // pred_region
          %s200 = sand.u32 %s18, 1
          %s201 = scalar_lea.sflag [#allocation6], %s200
          %s202 = sand.u32 %s94, 1
          %s203 = smul.addr %s202, 8
          %s204 = scalar_lea.vmem [#allocation7], %s203
          %s206 = ssub.s32 128, 128
          %207 = vsyncadd %s201, %s206
          %s208 = smul.addr %s25, 3
          %s209 = sadd.s32 2, %s208
          %s210 = smul.addr %s209, 128
          %s211 = scalar_lea.hbm %s2, %s210
          %s213 = sshll.u32 %s204, 4
          %s214 = int_to_ptr.vmem [resolvable:$true] %s213
          %216 = dma.hbm_to_vmem [thread:$0]  %s211, 128, %s214, %s201
        $region28: #{tpu_custom_call.1} parent=15 // pred_fallthru
          _
      $region16: #{tpu_custom_call.1} parent=5 // pred_fallthru
        _
      %p217 = scmp.le.s32.totalorder 1, %s18
      %p218 = scmp.lt.s32.totalorder %s18, 5
      %p219 = pnand %p217, %p218
      %p220 = pneg %p219
      // Predicated region
      $region29: #{tpu_custom_call.1} parent=5 // pred_check
        _
      $region30: #{tpu_custom_call.1} parent=5 // pred_check_branch
        %222 = sbr.rel (%p219) target = $region32
      $region31: #{tpu_custom_call.1} parent=5 // pred_region
        %s223 = ssub.s32 %s18, 1
        %s224 = sand.u32 %s45, 1
        %s225 = scalar_lea.sflag [#allocation3], %s224
        %s226 = sand.u32 %s45, 1
        %s227 = smul.addr %s226, 8
        %s228 = scalar_lea.vmem [#allocation2], %s227
        // Predicated region
        $region33: #{tpu_custom_call.1} parent=31 // pred_check
          %p229 = pneg %p58
        $region34: #{tpu_custom_call.1} parent=31 // pred_check_branch
          %231 = sbr.rel (%p229) target = $region36
        $region35: #{tpu_custom_call.1} parent=31 // pred_region
          %232 = dma.done %s225, 128
        $region36: #{tpu_custom_call.1} parent=31 // pred_fallthru
          _
        %s233 = sand.u32 %s23, 1
        %s234 = scalar_lea.sflag [#allocation6], %s233
        %s235 = sand.u32 %s71, 1
        %s236 = smul.addr %s235, 8
        %s237 = scalar_lea.vmem [#allocation5], %s236
        // Predicated region
        $region37: #{tpu_custom_call.1} parent=31 // pred_check
          %p238 = pneg %p84
        $region38: #{tpu_custom_call.1} parent=31 // pred_check_branch
          %240 = sbr.rel (%p238) target = $region40
        $region39: #{tpu_custom_call.1} parent=31 // pred_region
          %241 = dma.done %s234, 128
        $region40: #{tpu_custom_call.1} parent=31 // pred_fallthru
          _
        %s242 = sand.u32 %s23, 1
        %s243 = scalar_lea.sflag [#allocation6], %s242
        %s244 = sand.u32 %s97, 1
        %s245 = smul.addr %s244, 8
        %s246 = scalar_lea.vmem [#allocation7], %s245
        // Predicated region
        $region41: #{tpu_custom_call.1} parent=31 // pred_check
          %p247 = pneg %p110
        $region42: #{tpu_custom_call.1} parent=31 // pred_check_branch
          %249 = sbr.rel (%p247) target = $region44
        $region43: #{tpu_custom_call.1} parent=31 // pred_region
          %250 = dma.done %s243, 128
        $region44: #{tpu_custom_call.1} parent=31 // pred_fallthru
          _
        %s251 = sand.u32 %s45, 1
        %s252 = scalar_lea.sflag [#allocation3], %s251
        %s253 = sand.u32 %s45, 1
        %s254 = smul.addr %s253, 8
        %s255 = scalar_lea.vmem [#allocation2], %s254
        %p256 = pneg %p58
        %p257 = pneg %p55
        %s258 = sand.u32 %s23, 1
        %s259 = scalar_lea.sflag [#allocation6], %s258
        %s260 = sand.u32 %s71, 1
        %s261 = smul.addr %s260, 8
        %s262 = scalar_lea.vmem [#allocation5], %s261
        %p263 = pneg %p84
        %p264 = pneg %p81
        %s265 = sand.u32 %s23, 1
        %s266 = scalar_lea.sflag [#allocation6], %s265
        %s267 = sand.u32 %s97, 1
        %s268 = smul.addr %s267, 8
        %s269 = scalar_lea.vmem [#allocation7], %s268
        %p270 = pneg %p110
        %p271 = pneg %p107
        %p272 = pneg %p138
        %p273 = pneg %p135
        %s274 = sand.u32 %s125, 1
        %s275 = scalar_lea.sflag [#allocation4], %s274
        %s276 = sand.u32 %s125, 1
        %s277 = smul.addr %s276, 8
        %s278 = scalar_lea.vmem [#allocation8], %s277
        %v279 = vld [vmem:[%s228] sm:$0xff]
        %v280 = vmul.f32 %v279, 0.35355338
        %v281 = vld [vmem:[%s237] sm:$0xff]
        %v282 = vld [vmem:[%s246] sm:$0xff]
        %283 = vxpose.xlu0.b32.start [1/16] %v281, 128
        %284 = vxpose.xlu0.b32.cont [2/16] 0.0, 128
        %285 = vxpose.xlu0.b32.cont [3/16] 0.0, 128
        %286 = vxpose.xlu0.b32.cont [4/16] 0.0, 128
        %287 = vxpose.xlu0.b32.cont [5/16] 0.0, 128
        %288 = vxpose.xlu0.b32.cont [6/16] 0.0, 128
        %289 = vxpose.xlu0.b32.cont [7/16] 0.0, 128
        %290 = vxpose.xlu0.b32.cont [8/16] 0.0, 128
        %291 = vxpose.xlu0.b32.cont [9/16] 0.0, 128
        %292 = vxpose.xlu0.b32.cont [10/16] 0.0, 128
        %293 = vxpose.xlu0.b32.cont [11/16] 0.0, 128
        %294 = vxpose.xlu0.b32.cont [12/16] 0.0, 128
        %295 = vxpose.xlu0.b32.cont [13/16] 0.0, 128
        %296 = vxpose.xlu0.b32.cont [14/16] 0.0, 128
        %297 = vxpose.xlu0.b32.cont [15/16] 0.0, 128
        %298 = vxpose.xlu0.b32.end [16/16] 0.0, 128
        %v299 = vpop.trf.xlu0
        %v300 = vpop.trf.xlu0
        %v301 = vpop.trf.xlu0
        %v302 = vpop.trf.xlu0
        %v303 = vpop.trf.xlu0
        %v304 = vpop.trf.xlu0
        %v305 = vpop.trf.xlu0
        %v306 = vpop.trf.xlu0
        %v307 = vpop.trf.xlu0
        %v308 = vpop.trf.xlu0
        %v309 = vpop.trf.xlu0
        %v310 = vpop.trf.xlu0
        %v311 = vpop.trf.xlu0
        %v312 = vpop.trf.xlu0
        %v313 = vpop.trf.xlu0
        %v314 = vpop.trf.xlu0
        %vm315 = vcmask 64512
        %v317 = vsel %vm315, %v299, 0
        %v320 = vsel %vm315, %v300, 0
        %v323 = vsel %vm315, %v301, 0
        %v326 = vsel %vm315, %v302, 0
        %v329 = vsel %vm315, %v303, 0
        %v332 = vsel %vm315, %v304, 0
        %v335 = vsel %vm315, %v305, 0
        %v338 = vsel %vm315, %v306, 0
        %v341 = vsel %vm315, %v307, 0
        %v344 = vsel %vm315, %v308, 0
        %v347 = vsel %vm315, %v309, 0
        %v350 = vsel %vm315, %v310, 0
        %v353 = vsel %vm315, %v311, 0
        %v356 = vsel %vm315, %v312, 0
        %v359 = vsel %vm315, %v313, 0
        %v362 = vsel %vm315, %v314, 0
        %364 = vmatprep.subr.mxu0 0.0
        %365 = vmatpush1.msra.mxu0 %v280
        %366 = vmatprep.subr.mxu0 0.0
        %367 = vmatpush1.msra.mxu0 0.0
        %368 = vmatprep.subr.mxu0 0.0
        %369 = vmatpush1.msra.mxu0 0.0
        %370 = vmatprep.subr.mxu0 0.0
        %371 = vmatpush1.msra.mxu0 0.0
        %372 = vmatprep.subr.mxu0 0.0
        %373 = vmatpush1.msra.mxu0 0.0
        %374 = vmatprep.subr.mxu0 0.0
        %375 = vmatpush1.msra.mxu0 0.0
        %376 = vmatprep.subr.mxu0 0.0
        %377 = vmatpush1.msra.mxu0 0.0
        %378 = vmatprep.subr.mxu0 0.0
        %379 = vmatpush1.msra.mxu0 0.0
        %380 = vmatprep.subr.mxu0 0.0
        %381 = vmatpush1.msra.mxu0 0.0
        %382 = vmatprep.subr.mxu0 0.0
        %383 = vmatpush1.msra.mxu0 0.0
        %384 = vmatprep.subr.mxu0 0.0
        %385 = vmatpush1.msra.mxu0 0.0
        %386 = vmatprep.subr.mxu0 0.0
        %387 = vmatpush1.msra.mxu0 0.0
        %388 = vmatprep.subr.mxu0 0.0
        %389 = vmatpush1.msra.mxu0 0.0
        %390 = vmatprep.subr.mxu0 0.0
        %391 = vmatpush1.msra.mxu0 0.0
        %392 = vmatprep.subr.mxu0 0.0
        %393 = vmatpush1.msra.mxu0 0.0
        %394 = vmatprep.subr.mxu0 0.0
        %395 = vmatpush1.msra.mxu0 0.0
        %396 = vmatprep.subr.mxu0 0.0
        %397 = vmatpush1.msra.mxu0 0.0
        %398 = vmatprep.subr.mxu0 0.0
        %399 = vmatpush1.msra.mxu0 0.0
        %400 = vmatprep.subr.mxu0 0.0
        %401 = vmatpush1.msra.mxu0 0.0
        %402 = vmatprep.subr.mxu0 0.0
        %403 = vmatpush1.msra.mxu0 0.0
        %404 = vmatprep.subr.mxu0 0.0
        %405 = vmatpush1.msra.mxu0 0.0
        %406 = vmatprep.subr.mxu0 0.0
        %407 = vmatpush1.msra.mxu0 0.0
        %408 = vmatprep.subr.mxu0 0.0
        %409 = vmatpush1.msra.mxu0 0.0
        %410 = vmatprep.subr.mxu0 0.0
        %411 = vmatpush1.msra.mxu0 0.0
        %412 = vmatprep.subr.mxu0 0.0
        %413 = vmatpush1.msra.mxu0 0.0
        %414 = vmatprep.subr.mxu0 0.0
        %415 = vmatpush1.msra.mxu0 0.0
        %416 = vmatprep.subr.mxu0 0.0
        %417 = vmatpush1.msra.mxu0 0.0
        %418 = vmatprep.subr.mxu0 0.0
        %419 = vmatpush1.msra.mxu0 0.0
        %420 = vmatprep.subr.mxu0 0.0
        %421 = vmatpush1.msra.mxu0 0.0
        %422 = vmatprep.subr.mxu0 0.0
        %423 = vmatpush1.msra.mxu0 0.0
        %424 = vmatprep.subr.mxu0 0.0
        %425 = vmatpush1.msra.mxu0 0.0
        %426 = vmatprep.subr.mxu0 0.0
        %427 = vmatpush1.msra.mxu0 0.0
        %428 = vmatprep.mubr.f32.mxu0 0.0
        %429 = vmatmul.mubr.f32.gmra.mrb[0].mxu0 %v317
        %v430 = vpop.f32.mrb[0].mxu0
        %v431 = vadd.f32 0.0, %v430
        %v432 = vpop.f32.mrb[0].mxu0
        %433 = vmatprep.mubr.f32.mxu0 0.0
        %434 = vmatmul.mubr.f32.gmra.mrb[0].mxu0 %v320
        %v435 = vpop.f32.mrb[0].mxu0
        %v436 = vadd.f32 0.0, %v435
        %v437 = vpop.f32.mrb[0].mxu0
        %438 = vmatprep.mubr.f32.mxu0 0.0
        %439 = vmatmul.mubr.f32.gmra.mrb[0].mxu0 %v323
        %v440 = vpop.f32.mrb[0].mxu0
        %v441 = vadd.f32 0.0, %v440
        %v442 = vpop.f32.mrb[0].mxu0
        %443 = vmatprep.mubr.f32.mxu0 0.0
        %444 = vmatmul.mubr.f32.gmra.mrb[0].mxu0 %v326
        %v445 = vpop.f32.mrb[0].mxu0
        %v446 = vadd.f32 0.0, %v445
        %v447 = vpop.f32.mrb[0].mxu0
        %448 = vmatprep.mubr.f32.mxu0 0.0
        %449 = vmatmul.mubr.f32.gmra.mrb[0].mxu0 %v329
        %v450 = vpop.f32.mrb[0].mxu0
        %v451 = vadd.f32 0.0, %v450
        %v452 = vpop.f32.mrb[0].mxu0
        %453 = vmatprep.mubr.f32.mxu0 0.0
        %454 = vmatmul.mubr.f32.gmra.mrb[0].mxu0 %v332
        %v455 = vpop.f32.mrb[0].mxu0
        %v456 = vadd.f32 0.0, %v455
        %v457 = vpop.f32.mrb[0].mxu0
        %458 = vmatprep.mubr.f32.mxu0 0.0
        %459 = vmatmul.mubr.f32.gmra.mrb[0].mxu0 %v335
        %v460 = vpop.f32.mrb[0].mxu0
        %v461 = vadd.f32 0.0, %v460
        %v462 = vpop.f32.mrb[0].mxu0
        %463 = vmatprep.mubr.f32.mxu0 0.0
        %464 = vmatmul.mubr.f32.gmra.mrb[0].mxu0 %v338
        %v465 = vpop.f32.mrb[0].mxu0
        %v466 = vadd.f32 0.0, %v465
        %v467 = vpop.f32.mrb[0].mxu0
        %468 = vmatprep.mubr.f32.mxu0 0.0
        %469 = vmatmul.mubr.f32.gmra.mrb[0].mxu0 %v341
        %v470 = vpop.f32.mrb[0].mxu0
        %v471 = vadd.f32 0.0, %v470
        %v472 = vpop.f32.mrb[0].mxu0
        %473 = vmatprep.mubr.f32.mxu0 0.0
        %474 = vmatmul.mubr.f32.gmra.mrb[0].mxu0 %v344
        %v475 = vpop.f32.mrb[0].mxu0
        %v476 = vadd.f32 0.0, %v475
        %v477 = vpop.f32.mrb[0].mxu0
        %478 = vmatprep.mubr.f32.mxu0 0.0
        %479 = vmatmul.mubr.f32.gmra.mrb[0].mxu0 %v347
        %v480 = vpop.f32.mrb[0].mxu0
        %v481 = vadd.f32 0.0, %v480
        %v482 = vpop.f32.mrb[0].mxu0
        %483 = vmatprep.mubr.f32.mxu0 0.0
        %484 = vmatmul.mubr.f32.gmra.mrb[0].mxu0 %v350
        %v485 = vpop.f32.mrb[0].mxu0
        %v486 = vadd.f32 0.0, %v485
        %v487 = vpop.f32.mrb[0].mxu0
        %488 = vmatprep.mubr.f32.mxu0 0.0
        %489 = vmatmul.mubr.f32.gmra.mrb[0].mxu0 %v353
        %v490 = vpop.f32.mrb[0].mxu0
        %v491 = vadd.f32 0.0, %v490
        %v492 = vpop.f32.mrb[0].mxu0
        %493 = vmatprep.mubr.f32.mxu0 0.0
        %494 = vmatmul.mubr.f32.gmra.mrb[0].mxu0 %v356
        %v495 = vpop.f32.mrb[0].mxu0
        %v496 = vadd.f32 0.0, %v495
        %v497 = vpop.f32.mrb[0].mxu0
        %498 = vmatprep.mubr.f32.mxu0 0.0
        %499 = vmatmul.mubr.f32.gmra.mrb[0].mxu0 %v359
        %v500 = vpop.f32.mrb[0].mxu0
        %v501 = vadd.f32 0.0, %v500
        %v502 = vpop.f32.mrb[0].mxu0
        %503 = vmatprep.mubr.f32.mxu0 0.0
        %504 = vmatmul.mubr.f32.gmra.mrb[0].mxu0 %v362
        %v505 = vpop.f32.mrb[0].mxu0
        %v506 = vadd.f32 0.0, %v505
        %v507 = vpop.f32.mrb[0].mxu0
        %508 = vdwg.mxu0
        %v509 = vlaneseq
        %v510 = vshrl.u32 %v509, 7
        %v511 = vadd.s32 %v510, 8
        %v512 = vadd.s32 %v510, 16
        %v513 = vadd.s32 %v510, 24
        %v514 = vadd.s32 %v510, 32
        %v515 = vadd.s32 %v510, 40
        %v516 = vadd.s32 %v510, 48
        %v517 = vadd.s32 %v510, 56
        %v518 = vadd.s32 %v510, 64
        %v519 = vadd.s32 %v510, 72
        %v520 = vadd.s32 %v510, 80
        %v521 = vadd.s32 %v510, 88
        %v522 = vadd.s32 %v510, 96
        %v523 = vadd.s32 %v510, 104
        %v524 = vadd.s32 %v510, 112
        %v525 = vadd.s32 %v510, 120
        %vm526 = vcmp.lt.s32.totalorder %v510, 16
        %vm527 = vcmp.lt.s32.totalorder %v511, 16
        %vm528 = vcmp.lt.s32.totalorder %v512, 16
        %vm529 = vcmp.lt.s32.totalorder %v513, 16
        %vm530 = vcmp.lt.s32.totalorder %v514, 16
        %vm531 = vcmp.lt.s32.totalorder %v515, 16
        %vm532 = vcmp.lt.s32.totalorder %v516, 16
        %vm533 = vcmp.lt.s32.totalorder %v517, 16
        %vm534 = vcmp.lt.s32.totalorder %v518, 16
        %vm535 = vcmp.lt.s32.totalorder %v519, 16
        %vm536 = vcmp.lt.s32.totalorder %v520, 16
        %vm537 = vcmp.lt.s32.totalorder %v521, 16
        %vm538 = vcmp.lt.s32.totalorder %v522, 16
        %vm539 = vcmp.lt.s32.totalorder %v523, 16
        %vm540 = vcmp.lt.s32.totalorder %v524, 16
        %vm541 = vcmp.lt.s32.totalorder %v525, 16
        %v542 = vsel %vm526, %v431, -1e+30
        %v543 = vsel %vm527, %v436, -1e+30
        %v544 = vsel %vm528, %v441, -1e+30
        %v545 = vsel %vm529, %v446, -1e+30
        %v546 = vsel %vm530, %v451, -1e+30
        %v547 = vsel %vm531, %v456, -1e+30
        %v548 = vsel %vm532, %v461, -1e+30
        %v549 = vsel %vm533, %v466, -1e+30
        %v550 = vsel %vm534, %v471, -1e+30
        %v551 = vsel %vm535, %v476, -1e+30
        %v552 = vsel %vm536, %v481, -1e+30
        %v553 = vsel %vm537, %v486, -1e+30
        %v554 = vsel %vm538, %v491, -1e+30
        %v555 = vsel %vm539, %v496, -1e+30
        %v556 = vsel %vm540, %v501, -1e+30
        %v557 = vsel %vm541, %v506, -1e+30
        %v558 = vmax.f32 %v542, %v546
        %v559 = vmax.f32 %v543, %v547
        %v560 = vmax.f32 %v544, %v548
        %v561 = vmax.f32 %v545, %v549
        %v562 = vmax.f32 %v558, %v550
        %v563 = vmax.f32 %v559, %v551
        %v564 = vmax.f32 %v560, %v552
        %v565 = vmax.f32 %v561, %v553
        %v566 = vmax.f32 %v562, %v554
        %v567 = vmax.f32 %v563, %v555
        %v568 = vmax.f32 %v564, %v556
        %v569 = vmax.f32 %v565, %v557
        %v570 = vmax.f32 %v566, %v567
        %v571 = vmax.f32 %v568, %v569
        %v572 = vmax.f32 %v570, %v571
        %v573 = vrot.slane %v572, 4
        %v574 = vmax.f32 %v572, %v573
        %v575 = vrot.slane %v574, 2
        %v576 = vmax.f32 %v574, %v575
        %v577 = vrot.slane %v576, 1
        %v578 = vmax.f32 %v576, %v577
        %v579 = vsub.f32 %v542, %v578
        %v580 = vsub.f32 %v543, %v578
        %v581 = vsub.f32 %v544, %v578
        %v582 = vsub.f32 %v545, %v578
        %v583 = vsub.f32 %v546, %v578
        %v584 = vsub.f32 %v547, %v578
        %v585 = vsub.f32 %v548, %v578
        %v586 = vsub.f32 %v549, %v578
        %v587 = vsub.f32 %v550, %v578
        %v588 = vsub.f32 %v551, %v578
        %v589 = vsub.f32 %v552, %v578
        %v590 = vsub.f32 %v553, %v578
        %v591 = vsub.f32 %v554, %v578
        %v592 = vsub.f32 %v555, %v578
        %v593 = vsub.f32 %v556, %v578
        %v594 = vsub.f32 %v557, %v578
        %v595 = vmul.f32 %v579, 1.442695
        %v596 = vpow.pop %v595
        %v597 = vmul.f32 %v580, 1.442695
        %v598 = vpow.pop %v597
        %v599 = vmul.f32 %v581, 1.442695
        %v600 = vpow.pop %v599
        %v601 = vmul.f32 %v582, 1.442695
        %v602 = vpow.pop %v601
        %v603 = vmul.f32 %v583, 1.442695
        %v604 = vpow.pop %v603
        %v605 = vmul.f32 %v584, 1.442695
        %v606 = vpow.pop %v605
        %v607 = vmul.f32 %v585, 1.442695
        %v608 = vpow.pop %v607
        %v609 = vmul.f32 %v586, 1.442695
        %v610 = vpow.pop %v609
        %v611 = vmul.f32 %v587, 1.442695
        %v612 = vpow.pop %v611
        %v613 = vmul.f32 %v588, 1.442695
        %v614 = vpow.pop %v613
        %v615 = vmul.f32 %v589, 1.442695
        %v616 = vpow.pop %v615
        %v617 = vmul.f32 %v590, 1.442695
        %v618 = vpow.pop %v617
        %v619 = vmul.f32 %v591, 1.442695
        %v620 = vpow.pop %v619
        %v621 = vmul.f32 %v592, 1.442695
        %v622 = vpow.pop %v621
        %v623 = vmul.f32 %v593, 1.442695
        %v624 = vpow.pop %v623
        %v625 = vmul.f32 %v594, 1.442695
        %v626 = vpow.pop %v625
        %v627 = vadd.f32 %v596, %v598
        %v628 = vadd.f32 %v627, %v600
        %v629 = vadd.f32 %v628, %v602
        %v630 = vadd.f32 %v629, %v604
        %v631 = vadd.f32 %v630, %v606
        %v632 = vadd.f32 %v631, %v608
        %v633 = vadd.f32 %v632, %v610
        %v634 = vadd.f32 %v633, %v612
        %v635 = vadd.f32 %v634, %v614
        %v636 = vadd.f32 %v635, %v616
        %v637 = vadd.f32 %v636, %v618
        %v638 = vadd.f32 %v637, %v620
        %v639 = vadd.f32 %v638, %v622
        %v640 = vadd.f32 %v639, %v624
        %v641 = vadd.f32 %v640, %v626
        %v642 = vrot.slane %v641, 4
        %v643 = vadd.f32 %v641, %v642
        %v644 = vrot.slane %v643, 2
        %v645 = vadd.f32 %v643, %v644
        %v646 = vrot.slane %v645, 1
        %v647 = vadd.f32 %v645, %v646
        %648 = vmatprep.subr.mxu0 0.0
        %649 = vmatpush1.msra.mxu0 %v596
        %650 = vmatprep.subr.mxu0 0.0
        %651 = vmatpush1.msra.mxu0 %v598
        %652 = vmatprep.subr.mxu0 0.0
        %653 = vmatpush1.msra.mxu0 %v600
        %654 = vmatprep.subr.mxu0 0.0
        %655 = vmatpush1.msra.mxu0 %v602
        %656 = vmatprep.subr.mxu0 0.0
        %657 = vmatpush1.msra.mxu0 %v604
        %658 = vmatprep.subr.mxu0 0.0
        %659 = vmatpush1.msra.mxu0 %v606
        %660 = vmatprep.subr.mxu0 0.0
        %661 = vmatpush1.msra.mxu0 %v608
        %662 = vmatprep.subr.mxu0 0.0
        %663 = vmatpush1.msra.mxu0 %v610
        %664 = vmatprep.subr.mxu0 0.0
        %665 = vmatpush1.msra.mxu0 %v612
        %666 = vmatprep.subr.mxu0 0.0
        %667 = vmatpush1.msra.mxu0 %v614
        %668 = vmatprep.subr.mxu0 0.0
        %669 = vmatpush1.msra.mxu0 %v616
        %670 = vmatprep.subr.mxu0 0.0
        %671 = vmatpush1.msra.mxu0 %v618
        %672 = vmatprep.subr.mxu0 0.0
        %673 = vmatpush1.msra.mxu0 %v620
        %674 = vmatprep.subr.mxu0 0.0
        %675 = vmatpush1.msra.mxu0 %v622
        %676 = vmatprep.subr.mxu0 0.0
        %677 = vmatpush1.msra.mxu0 %v624
        %678 = vmatprep.subr.mxu0 0.0
        %679 = vmatpush1.msra.mxu0 %v626
        %680 = vmatprep.subr.mxu0 0.0
        %681 = vmatpush1.msra.mxu0 0.0
        %682 = vmatprep.subr.mxu0 0.0
        %683 = vmatpush1.msra.mxu0 0.0
        %684 = vmatprep.subr.mxu0 0.0
        %685 = vmatpush1.msra.mxu0 0.0
        %686 = vmatprep.subr.mxu0 0.0
        %687 = vmatpush1.msra.mxu0 0.0
        %688 = vmatprep.subr.mxu0 0.0
        %689 = vmatpush1.msra.mxu0 0.0
        %690 = vmatprep.subr.mxu0 0.0
        %691 = vmatpush1.msra.mxu0 0.0
        %692 = vmatprep.subr.mxu0 0.0
        %693 = vmatpush1.msra.mxu0 0.0
        %694 = vmatprep.subr.mxu0 0.0
        %695 = vmatpush1.msra.mxu0 0.0
        %696 = vmatprep.subr.mxu0 0.0
        %697 = vmatpush1.msra.mxu0 0.0
        %698 = vmatprep.subr.mxu0 0.0
        %699 = vmatpush1.msra.mxu0 0.0
        %700 = vmatprep.subr.mxu0 0.0
        %701 = vmatpush1.msra.mxu0 0.0
        %702 = vmatprep.subr.mxu0 0.0
        %703 = vmatpush1.msra.mxu0 0.0
        %704 = vmatprep.subr.mxu0 0.0
        %705 = vmatpush1.msra.mxu0 0.0
        %706 = vmatprep.subr.mxu0 0.0
        %707 = vmatpush1.msra.mxu0 0.0
        %708 = vmatprep.subr.mxu0 0.0
        %709 = vmatpush1.msra.mxu0 0.0
        %710 = vmatprep.subr.mxu0 0.0
        %711 = vmatpush1.msra.mxu0 0.0
        %712 = vmatprep.mubr.f32.mxu0 0.0
        %713 = vmatmul.mubr.f32.gmra.mrb[0].mxu0 %v282
        %v714 = vpop.f32.mrb[0].mxu0
        %v715 = vadd.f32 0.0, %v714
        %v716 = vpop.f32.mrb[0].mxu0
        %717 = vdwg.mxu0
        %v718 = vrcp.pop %v647
        %v719 = vmul.f32 1.0, %v718
        %v720 = vmul.f32 %v715, %v719
        %721 = vst [vmem:[%s278] sm:$0xff] %v720
        %s722 = sand.u32 %s125, 1
        %s723 = scalar_lea.sflag [#allocation4], %s722
        %s724 = sand.u32 %s125, 1
        %s725 = smul.addr %s724, 8
        %s726 = scalar_lea.vmem [#allocation8], %s725
        // Predicated region
        $region45: #{tpu_custom_call.1} parent=31 // pred_check
          %p727 = pneg %p135
        $region46: #{tpu_custom_call.1} parent=31 // pred_check_branch
          %729 = sbr.rel (%p727) target = $region48
        $region47: #{tpu_custom_call.1} parent=31 // pred_region
          %s731 = ssub.s32 128, 128
          %732 = vsyncadd %s723, %s731
          %s733 = sadd.s32 %s28, %s27
          %s734 = smul.addr %s733, 128
          %s735 = scalar_lea.hbm %s3, %s734
          %s737 = sshll.u32 %s726, 4
          %s738 = int_to_ptr.vmem [resolvable:$true] %s737
          %740 = dma.vmem_to_hbm [thread:$0]  %s738, 128, %s735, %s723
        $region48: #{tpu_custom_call.1} parent=31 // pred_fallthru
          _
      $region32: #{tpu_custom_call.1} parent=5 // pred_fallthru
        _
      %p741 = scmp.le.s32.totalorder 2, %s18
      // Predicated region
      $region49: #{tpu_custom_call.1} parent=5 // pred_check
        %p742 = pneg %p741
      $region50: #{tpu_custom_call.1} parent=5 // pred_check_branch
        %744 = sbr.rel (%p742) target = $region52
      $region51: #{tpu_custom_call.1} parent=5 // pred_region
        %s745 = ssub.s32 %s18, 2
        // Predicated region
        $region53: #{tpu_custom_call.1} parent=51 // pred_check
          %p746 = pneg %p141
        $region54: #{tpu_custom_call.1} parent=51 // pred_check_branch
          %748 = sbr.rel (%p746) target = $region56
        $region55: #{tpu_custom_call.1} parent=51 // pred_region
          %s749 = sand.u32 %s126, 1
          %s750 = scalar_lea.sflag [#allocation4], %s749
          %s751 = sand.u32 %s126, 1
          %s752 = smul.addr %s751, 8
          %s753 = scalar_lea.vmem [#allocation8], %s752
          %754 = dma.done %s750, 128
        $region56: #{tpu_custom_call.1} parent=51 // pred_fallthru
          _
      $region52: #{tpu_custom_call.1} parent=5 // pred_fallthru
        _
    $region6: #{tpu_custom_call.1} parent=1 // loop_footer
      %s22 = sadd.s32 1, %s18
    $region7: #{tpu_custom_call.1} parent=1 // loop_footer_branch
      %17 = sbr.rel target = $region3
    $region8: #{tpu_custom_call.1} parent=1 // loop_exit
      _
    %755 = vsyncpa [#allocation3], 1
    %s756 = scalar_lea.sflag [#allocation3], 1
    %757 = vsyncpa %s756, 1
    %758 = vsyncpa [#allocation6], 1
    %s759 = scalar_lea.sflag [#allocation6], 1
    %760 = vsyncpa %s759, 1
    %761 = vsyncpa [#allocation4], 1
    %s762 = scalar_lea.sflag [#allocation4], 1
    %763 = vsyncpa %s762, 1

</llo_original>
